<compile_context>
chip_gen: v7x
topology: tpu7x:2x2x1
jax: 0.10.0
libtpu: 0.0.40
codegen_flags: <defaults>
</compile_context>

<pallas_src>
import functools

import jax
import jax.numpy as jnp
from jax import lax
from jax.experimental import pallas as pl
from jax.experimental.pallas import tpu as pltpu

_LANE_WIDTHS = (1024, 512, 256, 128)   # preferred lane-dense last dims
_LANE_MAX = 1024
_NUM_CORE_SPLITS = 2                   # megacore split for the reduce path


def _max_block_rows_and_vmem():
    """Bigger tiles on v7x (3.2 TB/s HBM => per-step overhead matters more)."""
    try:
        kind = jax.devices()[0].device_kind.lower()
    except Exception:
        kind = ""
    if "v7" in kind or "tpu7" in kind:
        return 512, 48 * 1024 * 1024
    return 256, 32 * 1024 * 1024


def _focal_loss_math(x, t, alpha: float, gamma: float, approx_recip: bool):
    """Per-element sigmoid focal loss in f32 (matches the torchvision formula)."""
    # One shared exp(-|x|) feeds both sigmoid(x) and the stable BCE-with-logits.
    e = jnp.exp(-jnp.abs(x))
    inv = pl.reciprocal(1.0 + e, approx=approx_recip)      # EUP-friendly
    p = jnp.where(x >= 0.0, inv, e * inv)                  # sigmoid(x)
    ce = jnp.maximum(x, 0.0) - x * t + jnp.log1p(e)        # BCE with logits

    if alpha >= 0.0:
        # Fold alpha_t into ce immediately (shortens live ranges).
        ce = ce * (alpha * t + (1.0 - alpha) * (1.0 - t))

    if gamma == 0.0:
        return ce

    p_t = p * t + (1.0 - p) * (1.0 - t)
    # Clamp: f32 rounding can make (1 - p_t) a tiny negative -> NaN in pow.
    base = jnp.maximum(1.0 - p_t, 0.0)
    if float(gamma).is_integer() and 0 < gamma <= 16:
        # Integer gamma (the common case, e.g. gamma=2): exponentiation by
        # squaring on the VPU instead of exp(gamma*log(x)) on the EUP.
        g = int(gamma)
        acc = None
        sq = base
        while g > 0:
            if g & 1:
                acc = sq if acc is None else acc * sq
            g >>= 1
            if g:
                sq = sq * sq
        modulator = acc
    else:
        modulator = jnp.power(base, gamma)
    return ce * modulator


def _focal_loss_kernel(x_ref, t_ref, o_ref, *, alpha, gamma, approx_recip):
    x = x_ref[...].astype(jnp.float32)
    t = t_ref[...].astype(jnp.float32)
    o_ref[...] = _focal_loss_math(x, t, alpha, gamma, approx_recip).astype(o_ref.dtype)


def _focal_loss_reduce_kernel(x_ref, t_ref, acc_ref, *, alpha, gamma,
                              approx_recip, n_valid, block_rows, lane,
                              num_blocks, inner, acc_rows, needs_mask):
    c = pl.program_id(0)          # core-split ("parallel") axis
    i = pl.program_id(1)          # reduction ("arbitrary") axis
    bid = c * inner + i           # global row-block id

    @pl.when(i == 0)
    def _():
        acc_ref[...] = jnp.zeros_like(acc_ref)

    x = x_ref[...].astype(jnp.float32)
    t = t_ref[...].astype(jnp.float32)
    loss = _focal_loss_math(x, t, alpha, gamma, approx_recip)

    n_sub = block_rows // acc_rows     # static

    def _accumulate(val):
        # (block_rows, lane) -> (acc_rows, lane) with aligned-slice vreg adds
        # only; the final cross-sublane reduce happens once in the wrapper.
        part = val[0:acc_rows, :]
        for k in range(1, n_sub):
            part = part + val[k * acc_rows:(k + 1) * acc_rows, :]
        acc_ref[0] += part

    if needs_mask:
        # Only the last valid block can contain padded / out-of-bounds
        # elements -> masking lives on a cold path.
        @pl.when(bid < num_blocks - 1)
        def _():
            _accumulate(loss)

        @pl.when(bid == num_blocks - 1)
        def _():
            row_ids = lax.broadcasted_iota(jnp.int32, loss.shape, 0)
            col_ids = lax.broadcasted_iota(jnp.int32, loss.shape, 1)
            local = row_ids * lane + col_ids
            limit = n_valid - bid * (block_rows * lane)
            _accumulate(jnp.where(local < limit, loss, 0.0))
    else:
        @pl.when(bid < num_blocks)   # skip duplicated (clamped) blocks
        def _():
            _accumulate(loss)


def sigmoid_focal_loss(inputs, targets, alpha: float = 0.25,
                       gamma: float = 0.0, reduction: str = "none"):
    if reduction not in ("none", "mean", "sum"):
        raise ValueError(f"Invalid reduction: {reduction}")

    orig_shape = inputs.shape
    orig_dtype = inputs.dtype
    n = int(inputs.size)

    max_rows, vmem_limit = _max_block_rows_and_vmem()

    # Pick a lane width that divides n so no padded copies of the inputs (and
    # no output slice) are needed; fall back to one small pad otherwise.
    lane = None
    for cand in _LANE_WIDTHS:
        if n % cand == 0:
            lane = cand
            break
    if lane is None:
        lane = _LANE_MAX

    flat_x = jnp.reshape(inputs, (-1,))
    flat_t = jnp.reshape(targets, (-1,))
    padded = ((n + lane - 1) // lane) * lane
    pad = padded - n
    if pad:
        flat_x = jnp.pad(flat_x, (0, pad))
        flat_t = jnp.pad(flat_t, (0, pad))
    x2d = flat_x.reshape(-1, lane)
    t2d = flat_t.reshape(-1, lane)

    rows = padded // lane
    # Keep per-step bytes roughly constant regardless of the lane width.
    block_rows = min(rows, max_rows * (_LANE_MAX // lane))
    num_blocks = pl.cdiv(rows, block_rows)

    approx_recip = jnp.dtype(orig_dtype).itemsize < 4
    item_x = jnp.dtype(inputs.dtype).itemsize
    item_t = jnp.dtype(targets.dtype).itemsize

    if reduction == "none":
        kernel = functools.partial(
            _focal_loss_kernel, alpha=float(alpha), gamma=float(gamma),
            approx_recip=approx_recip)
        out2d = pl.pallas_call(
            kernel,
            out_shape=jax.ShapeDtypeStruct((rows, lane), orig_dtype),
            grid_spec=pltpu.PrefetchScalarGridSpec(
                num_scalar_prefetch=0,
                grid=(num_blocks,),
                in_specs=[pl.BlockSpec((block_rows, lane), lambda i: (i, 0)),
                          pl.BlockSpec((block_rows, lane), lambda i: (i, 0))],
                out_specs=pl.BlockSpec((block_rows, lane), lambda i: (i, 0)),
            ),
            compiler_params=pltpu.CompilerParams(
                dimension_semantics=("parallel",),
                vmem_limit_bytes=vmem_limit),
            cost_estimate=pl.CostEstimate(
                flops=20 * n, transcendentals=3 * n,
                bytes_accessed=n * (2 * item_x + item_t)),
        )(x2d, t2d)
        if pad:
            return out2d.reshape(-1)[:n].reshape(orig_shape)
        return out2d.reshape(orig_shape)

    # reduction in ("mean", "sum"): in-kernel partial reduction, one resident
    # f32 accumulator per core split so megacore can shard the grid on v7x.
    n_splits = _NUM_CORE_SPLITS if num_blocks >= 2 else 1
    inner = pl.cdiv(num_blocks, n_splits)
    acc_rows = 8 if block_rows % 8 == 0 else block_rows
    needs_mask = (num_blocks * block_rows * lane) != n

    def in_map(c, i):
        # Clamp so every fetched block index is valid; duplicated blocks are
        # skipped inside the kernel via pl.when(bid < num_blocks).
        return (jnp.minimum(c * inner + i, num_blocks - 1), 0)

    kernel = functools.partial(
        _focal_loss_reduce_kernel, alpha=float(alpha), gamma=float(gamma),
        approx_recip=approx_recip, n_valid=n, block_rows=block_rows,
        lane=lane, num_blocks=num_blocks, inner=inner, acc_rows=acc_rows,
        needs_mask=needs_mask)

    partials = pl.pallas_call(
        kernel,
        out_shape=jax.ShapeDtypeStruct((n_splits, acc_rows, lane), jnp.float32),
        grid_spec=pltpu.PrefetchScalarGridSpec(
            num_scalar_prefetch=0,
            grid=(n_splits, inner),
            in_specs=[pl.BlockSpec((block_rows, lane), in_map),
                      pl.BlockSpec((block_rows, lane), in_map)],
            out_specs=pl.BlockSpec((1, acc_rows, lane),
                                   lambda c, i: (c, 0, 0)),
        ),
        compiler_params=pltpu.CompilerParams(
            dimension_semantics=("parallel", "arbitrary"),
            vmem_limit_bytes=vmem_limit),
        cost_estimate=pl.CostEstimate(
            flops=22 * n, transcendentals=3 * n,
            bytes_accessed=n * (item_x + item_t)),
    )(x2d, t2d)

    total = jnp.sum(partials)
    if reduction == "mean":
        total = total / n
    # Accumulation is f32; the final scalar follows the input dtype.
    return total.astype(orig_dtype)


class FocalLoss:
    """JAX/Pallas equivalent of the PyTorch FocalLoss wrapper module."""

    # TODO(synk): no custom_vjp is defined for the Pallas kernel, so gradients
    # (the `loss.backward()` part of the spec) are not provided here.

    def __init__(self, alpha: float = 0.25, gamma: float = 0.0,
                 reduction: str = "none"):
        self.alpha = alpha
        self.gamma = gamma
        self.reduction = reduction

    def __call__(self, inputs, targets):
        return sigmoid_focal_loss(
            inputs, targets,
            alpha=self.alpha, gamma=self.gamma, reduction=self.reduction,
        )


def _reference_focal_loss(inputs, targets, alpha, gamma, reduction):
    x = inputs.astype(jnp.float32)
    t = targets.astype(jnp.float32)
    p = jax.nn.sigmoid(x)
    ce = jnp.maximum(x, 0.0) - x * t + jnp.log1p(jnp.exp(-jnp.abs(x)))
    p_t = p * t + (1.0 - p) * (1.0 - t)
    loss = ce * jnp.power(1.0 - p_t, gamma) if gamma != 0.0 else ce
    if alpha >= 0:
        alpha_t = alpha * t + (1.0 - alpha) * (1.0 - t)
        loss = alpha_t * loss
    if reduction == "mean":
        return jnp.mean(loss)
    if reduction == "sum":
        return jnp.sum(loss)
    return loss


if __name__ == "__main__":
    key = jax.random.PRNGKey(0)
    k_in, k_tg, k_in2, k_tg2 = jax.random.split(key, 4)

    # NCHW-style logits and binary targets (small shapes).
    x = jax.random.normal(k_in, (2, 4, 16, 16), dtype=jnp.float32)
    t = (jax.random.uniform(k_tg, (2, 4, 16, 16)) > 0.5).astype(jnp.float32)

    # Standard focal loss (gamma=2), no reduction.
    out = jax.block_until_ready(FocalLoss(alpha=0.25, gamma=2.0)(x, t))
    ref = _reference_focal_loss(x, t, 0.25, 2.0, "none")
    assert out.shape == x.shape
    assert jnp.allclose(out, ref, atol=1e-5, rtol=1e-5), "mismatch (gamma=2, none)"

    # Default module configuration (alpha=0.25, gamma=0.0).
    out_d = jax.block_until_ready(FocalLoss()(x, t))
    ref_d = _reference_focal_loss(x, t, 0.25, 0.0, "none")
    assert jnp.allclose(out_d, ref_d, atol=1e-5, rtol=1e-5), "mismatch (default)"

    # Non-integer gamma exercises the jnp.power path.
    out_g = jax.block_until_ready(FocalLoss(alpha=0.25, gamma=1.5)(x, t))
    ref_g = _reference_focal_loss(x, t, 0.25, 1.5, "none")
    assert jnp.allclose(out_g, ref_g, atol=1e-5, rtol=1e-5), "mismatch (gamma=1.5)"

    # In-kernel reductions (mean / sum).
    out_m = jax.block_until_ready(
        FocalLoss(alpha=0.25, gamma=2.0, reduction="mean")(x, t))
    ref_m = _reference_focal_loss(x, t, 0.25, 2.0, "mean")
    assert jnp.allclose(out_m, ref_m, atol=1e-4, rtol=1e-4), "mismatch (mean)"

    out_s = jax.block_until_ready(
        FocalLoss(alpha=0.25, gamma=2.0, reduction="sum")(x, t))
    ref_s = _reference_focal_loss(x, t, 0.25, 2.0, "sum")
    assert jnp.allclose(out_s, ref_s, atol=1e-3, rtol=1e-4), "mismatch (sum)"

    # bf16 inputs: no wrapper up-cast, output emitted in bf16 (approx recip).
    x_bf = x.astype(jnp.bfloat16)
    out_b = jax.block_until_ready(FocalLoss(alpha=0.25, gamma=2.0)(x_bf, t))
    ref_b = _reference_focal_loss(x_bf, t, 0.25, 2.0, "none").astype(jnp.bfloat16)
    assert out_b.dtype == jnp.bfloat16
    assert jnp.allclose(out_b.astype(jnp.float32), ref_b.astype(jnp.float32),
                        atol=2e-2, rtol=2e-2), "mismatch (bf16)"

    # Ragged size (n=105): exercises the pad fallback + cold tail-mask path.
    xr = jax.random.normal(k_in2, (3, 5, 7), dtype=jnp.float32)
    tr = (jax.random.uniform(k_tg2, (3, 5, 7)) > 0.5).astype(jnp.float32)
    out_r = jax.block_until_ready(FocalLoss(alpha=0.25, gamma=2.0)(xr, tr))
    ref_r = _reference_focal_loss(xr, tr, 0.25, 2.0, "none")
    assert out_r.shape == xr.shape
    assert jnp.allclose(out_r, ref_r, atol=1e-5, rtol=1e-5), "mismatch (ragged none)"

    out_rm = jax.block_until_ready(
        FocalLoss(alpha=0.25, gamma=2.0, reduction="mean")(xr, tr))
    ref_rm = _reference_focal_loss(xr, tr, 0.25, 2.0, "mean")
    assert jnp.allclose(out_rm, ref_rm, atol=1e-5, rtol=1e-5), "mismatch (ragged mean)"

    print("KERNEL_OK")
</pallas_src>

<mosaic_0001>
module attributes {stable_mosaic.version = 11 : i64} {
  func.func @_focal_loss_kernel(%arg0: i32, %arg1: memref<2x1024xf32, #tpu.memory_space<vmem>>, %arg2: memref<2x1024xf32, #tpu.memory_space<vmem>>, %arg3: memref<2x1024xf32, #tpu.memory_space<vmem>>) attributes {dimension_semantics = [#tpu.dimension_semantics<parallel>], iteration_bounds = array<i64: 1>, scalar_prefetch = 0 : i64, scratch_operands = 0 : i64, tpu.core_type = #tpu.core_type<tc>, window_params = [{transform_indices = @transform_0, window_bounds = array<i64: 2, 1024>}, {transform_indices = @transform_1, window_bounds = array<i64: 2, 1024>}, {transform_indices = @transform_2, window_bounds = array<i64: 2, 1024>}]} {
    %c0 = arith.constant 0 : index
    %c0_0 = arith.constant 0 : index
    %0 = vector.load %arg1[%c0, %c0_0] : memref<2x1024xf32, #tpu.memory_space<vmem>>, vector<2x1024xf32>
    %c0_1 = arith.constant 0 : index
    %c0_2 = arith.constant 0 : index
    %1 = vector.load %arg2[%c0_1, %c0_2] : memref<2x1024xf32, #tpu.memory_space<vmem>>, vector<2x1024xf32>
    %2 = math.absf %0 : vector<2x1024xf32>
    %cst = arith.constant 0.000000e+00 : f32
    %3 = vector.broadcast %cst : f32 to vector<2x1024xf32>
    %4 = arith.subf %3, %2 : vector<2x1024xf32>
    %5 = math.exp %4 : vector<2x1024xf32>
    %cst_3 = arith.constant 1.000000e+00 : f32
    %6 = vector.broadcast %cst_3 : f32 to vector<2x1024xf32>
    %7 = arith.addf %6, %5 : vector<2x1024xf32>
    %8 = tpu.reciprocal %7 : vector<2x1024xf32> -> vector<2x1024xf32>
    %cst_4 = arith.constant 0.000000e+00 : f32
    %9 = vector.broadcast %cst_4 : f32 to vector<2x1024xf32>
    %10 = arith.cmpf oge, %0, %9 : vector<2x1024xf32>
    %11 = arith.mulf %5, %8 : vector<2x1024xf32>
    %12 = arith.select %10, %8, %11 : vector<2x1024xi1>, vector<2x1024xf32>
    %cst_5 = arith.constant 0.000000e+00 : f32
    %13 = vector.broadcast %cst_5 : f32 to vector<2x1024xf32>
    %14 = arith.maximumf %0, %13 : vector<2x1024xf32>
    %15 = arith.mulf %0, %1 : vector<2x1024xf32>
    %16 = arith.subf %14, %15 : vector<2x1024xf32>
    %17 = math.log1p %5 : vector<2x1024xf32>
    %18 = arith.addf %16, %17 : vector<2x1024xf32>
    %cst_6 = arith.constant 2.500000e-01 : f32
    %19 = vector.broadcast %cst_6 : f32 to vector<2x1024xf32>
    %20 = arith.mulf %19, %1 : vector<2x1024xf32>
    %cst_7 = arith.constant 1.000000e+00 : f32
    %21 = vector.broadcast %cst_7 : f32 to vector<2x1024xf32>
    %22 = arith.subf %21, %1 : vector<2x1024xf32>
    %cst_8 = arith.constant 7.500000e-01 : f32
    %23 = vector.broadcast %cst_8 : f32 to vector<2x1024xf32>
    %24 = arith.mulf %23, %22 : vector<2x1024xf32>
    %25 = arith.addf %20, %24 : vector<2x1024xf32>
    %26 = arith.mulf %18, %25 : vector<2x1024xf32>
    %27 = arith.mulf %12, %1 : vector<2x1024xf32>
    %cst_9 = arith.constant 1.000000e+00 : f32
    %28 = vector.broadcast %cst_9 : f32 to vector<2x1024xf32>
    %29 = arith.subf %28, %12 : vector<2x1024xf32>
    %cst_10 = arith.constant 1.000000e+00 : f32
    %30 = vector.broadcast %cst_10 : f32 to vector<2x1024xf32>
    %31 = arith.subf %30, %1 : vector<2x1024xf32>
    %32 = arith.mulf %29, %31 : vector<2x1024xf32>
    %33 = arith.addf %27, %32 : vector<2x1024xf32>
    %cst_11 = arith.constant 1.000000e+00 : f32
    %34 = vector.broadcast %cst_11 : f32 to vector<2x1024xf32>
    %35 = arith.subf %34, %33 : vector<2x1024xf32>
    %cst_12 = arith.constant 0.000000e+00 : f32
    %36 = vector.broadcast %cst_12 : f32 to vector<2x1024xf32>
    %37 = arith.maximumf %35, %36 : vector<2x1024xf32>
    %38 = arith.mulf %37, %37 : vector<2x1024xf32>
    %39 = arith.mulf %26, %38 : vector<2x1024xf32>
    %c0_13 = arith.constant 0 : index
    %c0_14 = arith.constant 0 : index
    %40 = vector.load %arg3[%c0_13, %c0_14] : memref<2x1024xf32, #tpu.memory_space<vmem>>, vector<2x1024xf32>
    tpu.vector_store %arg3[%c0_13, %c0_14], %39 {strides = array<i32>} : memref<2x1024xf32, #tpu.memory_space<vmem>>, vector<2x1024xf32>,
    return
  }
  func.func @transform_0(%arg0: i32) -> (i32, i32) {
    %c0_i32 = arith.constant 0 : i32
    %c0_i32_0 = arith.constant 0 : i32
    return %arg0, %c0_i32 : i32, i32
  }
  func.func @transform_1(%arg0: i32) -> (i32, i32) {
    %c0_i32 = arith.constant 0 : i32
    %c0_i32_0 = arith.constant 0 : i32
    return %arg0, %c0_i32 : i32, i32
  }
  func.func @transform_2(%arg0: i32) -> (i32, i32) {
    %c0_i32 = arith.constant 0 : i32
    %c0_i32_0 = arith.constant 0 : i32
    return %arg0, %c0_i32 : i32, i32
  }
}

</mosaic_0001>

<llo_original>
// kernel: tpu_custom_call.1
$region0: #{tpu_custom_call.1}
  #allocation0 [shape = 'u32[]', space=smem, size = 0x4, offset = 0x4, fixed_abs, tag = 'smem constant byte address 0x4 - core index']
  #allocation1 [shape = 'u32[144,128]{1,0:T(1,128)}', space=vmem, size = 0x12000, scoped, tag = 'internal scratch']
  %s0 = inlined_call_operand.hbm [shape: f32[2,1024], index: 0, kind: input, shape index: {}]
  %s1 = inlined_call_operand.hbm [shape: f32[2,1024], index: 1, kind: input, shape index: {}]
  %s2 = inlined_call_operand.hbm [shape: f32[2,1024], index: 2, kind: output, shape index: {}]
  %s3 = sld [smem:[#allocation0]]
  $region26: #{tpu_custom_call.1} parent=0
    _
  %s5 = ssub.s32 1, %s3
  %s6 = scalar_select 0, %s5, %s3
  $region1: #{tpu_custom_call.1} parent=0
    #allocation2 [shape = 'u8[8192]{0}', space=vmem, size = 0x2000, scoped, tag = 'input window, operand 0, single buffered']
    #allocation3 [shape = 's32[1]{0}', space=sflag, size = 0x4, scoped, tag = 'scoped memory for tpu_custom_call.1']
    #allocation4 [shape = 's32[1]{0}', space=sflag, size = 0x4, scoped, tag = 'scoped memory for tpu_custom_call.1']
    #allocation5 [shape = 'u8[8192]{0}', space=vmem, size = 0x2000, scoped, tag = 'input window, operand 1, single buffered']
    #allocation6 [shape = 's32[1]{0}', space=sflag, size = 0x4, scoped, tag = 'scoped memory for tpu_custom_call.1']
    #allocation7 [shape = 'u8[8192]{0}', space=vmem, size = 0x2000, scoped, tag = 'output window, operand 0, single buffered']
    %7 = vsyncpa [#allocation3], 0
    %8 = vsyncpa [#allocation6], 0
    %9 = vsyncpa [#allocation4], 0
    // Predicated region
    $region2: #{tpu_custom_call.1} parent=1 // pred_check
      _
    $region3: #{tpu_custom_call.1} parent=1 // pred_check_branch
      %11 = sbr.rel (0) target = $region5
    $region4: #{tpu_custom_call.1} parent=1 // pred_region
      %s13 = ssub.s32 256, 256
      %14 = vsyncadd [#allocation3], %s13
      %s16 = sshll.u32 [#allocation2], 4
      %s17 = int_to_ptr.vmem [resolvable:$true] %s16
      %19 = dma.hbm_to_vmem [thread:$0]  %s0, 256, %s17, [#allocation3]
    $region5: #{tpu_custom_call.1} parent=1 // pred_fallthru
      _
    // Predicated region
    $region6: #{tpu_custom_call.1} parent=1 // pred_check
      _
    $region7: #{tpu_custom_call.1} parent=1 // pred_check_branch
      %21 = sbr.rel (0) target = $region9
    $region8: #{tpu_custom_call.1} parent=1 // pred_region
      %s23 = ssub.s32 256, 256
      %24 = vsyncadd [#allocation6], %s23
      %s26 = sshll.u32 [#allocation5], 4
      %s27 = int_to_ptr.vmem [resolvable:$true] %s26
      %29 = dma.hbm_to_vmem [thread:$0]  %s1, 256, %s27, [#allocation6]
    $region9: #{tpu_custom_call.1} parent=1 // pred_fallthru
      _
    // Predicated region
    $region10: #{tpu_custom_call.1} parent=1 // pred_check
      _
    $region11: #{tpu_custom_call.1} parent=1 // pred_check_branch
      %31 = sbr.rel (0) target = $region13
    $region12: #{tpu_custom_call.1} parent=1 // pred_region
      %32 = dma.done [#allocation3], 256
    $region13: #{tpu_custom_call.1} parent=1 // pred_fallthru
      _
    // Predicated region
    $region14: #{tpu_custom_call.1} parent=1 // pred_check
      _
    $region15: #{tpu_custom_call.1} parent=1 // pred_check_branch
      %34 = sbr.rel (0) target = $region17
    $region16: #{tpu_custom_call.1} parent=1 // pred_region
      %35 = dma.done [#allocation6], 256
    $region17: #{tpu_custom_call.1} parent=1 // pred_fallthru
      _
    %v36 = vld [vmem:[#allocation2] sm:$0xff]
    %v37 = vld [vmem:[#allocation2 + $0x8] sm:$0xff]
    %v38 = vld [vmem:[#allocation5] sm:$0xff]
    %v39 = vld [vmem:[#allocation5 + $0x8] sm:$0xff]
    %v40 = vand.u32 2147483647, %v36
    %v41 = vand.u32 2147483647, %v37
    %v42 = vsub.f32 0.0, %v40
    %v43 = vsub.f32 0.0, %v41
    %v44 = vmul.f32 %v42, 1.442695
    %v45 = vpow.pop %v44
    %v46 = vmul.f32 %v43, 1.442695
    %v47 = vpow.pop %v46
    %v48 = vadd.f32 %v45, 1.0
    %v49 = vadd.f32 %v47, 1.0
    %v50 = vrcp.pop %v48
    %v51 = vrcp.pop %v49
    %vm52 = vcmp.ge.f32.partialorder %v36, 0.0
    %vm53 = vcmp.ge.f32.partialorder %v37, 0.0
    %v54 = vmul.f32 %v45, %v50
    %v55 = vmul.f32 %v47, %v51
    %v56 = vsel %vm52, %v50, %v54
    %v57 = vsel %vm53, %v51, %v55
    %v58 = vmax.f32 %v36, 0.0
    %v59 = vmax.f32 %v37, 0.0
    %v60 = vmul.f32 %v36, %v38
    %v61 = vmul.f32 %v37, %v39
    %v62 = vsub.f32 %v58, %v60
    %v63 = vsub.f32 %v59, %v61
    %v64 = vadd.f32 %v45, 1.0
    %v65 = vlog2.pop %v64
    %v66 = vmul.f32 %v65, 0.6931472
    %v67 = vmul.f32 -0.5, %v45
    %v68 = vadd.f32 %v67, 1.0
    %v69 = vmul.f32 %v68, %v45
    %v70 = vand.u32 2147483647, %v45
    %vm71 = vcmp.lt.f32.partialorder %v70, 0.0004427343
    %v72 = vsel %vm71, %v69, %v66
    %v73 = vadd.f32 %v47, 1.0
    %v74 = vlog2.pop %v73
    %v75 = vmul.f32 %v74, 0.6931472
    %v76 = vmul.f32 -0.5, %v47
    %v77 = vadd.f32 %v76, 1.0
    %v78 = vmul.f32 %v77, %v47
    %v79 = vand.u32 2147483647, %v47
    %vm80 = vcmp.lt.f32.partialorder %v79, 0.0004427343
    %v81 = vsel %vm80, %v78, %v75
    %v82 = vadd.f32 %v62, %v72
    %v83 = vadd.f32 %v63, %v81
    %v84 = vmul.f32 %v38, 0.25
    %v85 = vmul.f32 %v39, 0.25
    %v86 = vsub.f32 1.0, %v38
    %v87 = vsub.f32 1.0, %v39
    %v88 = vmul.f32 %v86, 0.75
    %v89 = vmul.f32 %v87, 0.75
    %v90 = vadd.f32 %v84, %v88
    %v91 = vadd.f32 %v85, %v89
    %v92 = vmul.f32 %v82, %v90
    %v93 = vmul.f32 %v83, %v91
    %v94 = vmul.f32 %v56, %v38
    %v95 = vmul.f32 %v57, %v39
    %v96 = vsub.f32 1.0, %v56
    %v97 = vsub.f32 1.0, %v57
    %v98 = vmul.f32 %v96, %v86
    %v99 = vmul.f32 %v97, %v87
    %v100 = vadd.f32 %v94, %v98
    %v101 = vadd.f32 %v95, %v99
    %v102 = vsub.f32 1.0, %v100
    %v103 = vsub.f32 1.0, %v101
    %v104 = vmax.f32 %v102, 0.0
    %v105 = vmax.f32 %v103, 0.0
    %v106 = vmul.f32 %v104, %v104
    %v107 = vmul.f32 %v105, %v105
    %v108 = vmul.f32 %v92, %v106
    %v109 = vmul.f32 %v93, %v107
    %110 = vst [vmem:[#allocation7] sm:$0xff] %v108
    %111 = vst [vmem:[#allocation7 + $0x8] sm:$0xff] %v109
    // Predicated region
    $region18: #{tpu_custom_call.1} parent=1 // pred_check
      _
    $region19: #{tpu_custom_call.1} parent=1 // pred_check_branch
      %113 = sbr.rel (0) target = $region21
    $region20: #{tpu_custom_call.1} parent=1 // pred_region
      %s115 = ssub.s32 256, 256
      %116 = vsyncadd [#allocation4], %s115
      %s118 = sshll.u32 [#allocation7], 4
      %s119 = int_to_ptr.vmem [resolvable:$true] %s118
      %121 = dma.vmem_to_hbm [thread:$0]  %s119, 256, %s2, [#allocation4]
    $region21: #{tpu_custom_call.1} parent=1 // pred_fallthru
      _
    // Predicated region
    $region22: #{tpu_custom_call.1} parent=1 // pred_check
      _
    $region23: #{tpu_custom_call.1} parent=1 // pred_check_branch
      %123 = sbr.rel (0) target = $region25
    $region24: #{tpu_custom_call.1} parent=1 // pred_region
      %124 = dma.done [#allocation4], 256
    $region25: #{tpu_custom_call.1} parent=1 // pred_fallthru
      _
    %125 = vsyncpa [#allocation3], 1
    %126 = vsyncpa [#allocation6], 1
    %127 = vsyncpa [#allocation4], 1

</llo_original>
